<compile_context>
chip_gen: v5e
topology: v5e:2x2
jax: 0.10.0
libtpu: 0.0.40
codegen_flags: <defaults>
</compile_context>

<pallas_src>
import functools
import math

import jax
import jax.numpy as jnp
from jax import lax
from jax.experimental import pallas as pl
from jax.experimental.pallas import tpu as pltpu


_LANE = 128          # lane width: class dim is padded to this
_NEG_BIG = -1e30     # finite "-inf" so 0 * log_prob on padded columns stays 0


def _classifier_kernel(x_ref, w_ref, b_ref, t_ref,
                       logits_ref, loss_part_ref, corr_part_ref,
                       *, num_classes, batch_size, tile_rows):
    """One batch tile: linear head + CE-with-logits + accuracy partial sums.

    x_ref:         (TB, D)       f32  flattened image tile
    w_ref:         (D, 128)      f32  weight, class dim zero-padded to 128
    b_ref:         (1, 128)      f32  bias,   class dim zero-padded to 128
    t_ref:         (TB, 128)     f32  one-hot targets, zero-padded
    logits_ref:    (TB, 128)     f32  raw logits (padded cols/rows are junk-but-defined)
    loss_part_ref: (1, 8, 128)   f32  per-tile loss sum (broadcast-filled)
    corr_part_ref: (1, 8, 128)   f32  per-tile correct count (broadcast-filled)
    """
    x = x_ref[...]
    w = w_ref[...]
    b = b_ref[...]
    t = t_ref[...]

    # --- predictor: linear layer on the MXU (lane-dense N=128) ---
    logits = jnp.dot(x, w, preferred_element_type=jnp.float32) + b
    logits_ref[...] = logits                       # unmasked, lane-dense store

    TB, NP = logits.shape
    col = lax.broadcasted_iota(jnp.int32, (TB, NP), 1)
    class_mask = col < num_classes
    masked_logits = jnp.where(class_mask, logits, jnp.float32(_NEG_BIG))

    # --- cross_entropy_with_logits: sum(-t * log_softmax(logits), -1) ---
    m = jnp.max(masked_logits, axis=-1, keepdims=True)
    shifted = masked_logits - m
    lse = jnp.log(jnp.sum(jnp.exp(shifted), axis=-1, keepdims=True))
    log_probs = shifted - lse                                   # (TB, 128)
    loss_per = jnp.sum(-t * log_probs, axis=-1, keepdims=True)  # (TB, 1)

    # --- batch-padding row mask ---
    i = pl.program_id(0)
    row = lax.broadcasted_iota(jnp.int32, (TB, 1), 0) + i * tile_rows
    valid = row < batch_size                                    # (TB, 1) bool

    loss_sum = jnp.sum(jnp.where(valid, loss_per, 0.0))

    # --- accuracy_with_logits: first-max argmax on logits and targets ---
    pred_idx = jnp.min(jnp.where(masked_logits == m, col, NP),
                       axis=-1, keepdims=True)                  # (TB, 1)
    masked_t = jnp.where(class_mask, t, jnp.float32(_NEG_BIG))
    t_max = jnp.max(masked_t, axis=-1, keepdims=True)
    gt_idx = jnp.min(jnp.where(masked_t == t_max, col, NP),
                     axis=-1, keepdims=True)                    # (TB, 1)
    correct = jnp.where(jnp.logical_and(valid, pred_idx == gt_idx), 1.0, 0.0)
    corr_sum = jnp.sum(correct)

    # Aligned (1,8,128) blocks -> plain unmasked vector stores every tile.
    loss_part_ref[...] = jnp.broadcast_to(loss_sum, loss_part_ref.shape)
    corr_part_ref[...] = jnp.broadcast_to(corr_sum, corr_part_ref.shape)


def _choose_batch_tile(batch, feat, n_pad, max_batch_tile=None):
    """Pick a batch tile that keeps double-buffered streams well under VMEM."""
    budget = 12 * 1024 * 1024                      # conservative: fits v5e/v7x
    per_row = (feat + 2 * n_pad) * 4 * 2           # x, targets, logits; x2 dbl-buf
    tb = max(8, min(512, (budget // per_row) // 8 * 8))
    b_pad8 = ((batch + 7) // 8) * 8
    tb = min(tb, b_pad8)
    if max_batch_tile is not None:
        tb = min(tb, max(8, (max_batch_tile // 8) * 8))
    return tb


@functools.partial(jax.jit, static_argnames=("max_batch_tile",))
def classifier_forward(image, targets, weight, bias, max_batch_tile=None):
    """Pallas-backed equivalent of Classifier.forward (logits, loss, acc).

    image:   (B, C, H, W) float32  (NCHW, like PyTorch)
    targets: (B, N)       float32  one-hot targets
    weight:  (D, N)       float32  where D = C*H*W
    bias:    (N,)         float32
    """
    B = image.shape[0]
    D = math.prod(image.shape[1:])
    N = weight.shape[1]
    assert N <= _LANE, "class dim > 128 not handled by this head"

    x = image.reshape(B, D).astype(jnp.float32)
    w_pad = jnp.zeros((D, _LANE), jnp.float32).at[:, :N].set(
        weight.astype(jnp.float32))
    b_pad = jnp.zeros((1, _LANE), jnp.float32).at[:, :N].set(
        bias.astype(jnp.float32).reshape(1, N))
    t_pad = jnp.zeros((B, _LANE), jnp.float32).at[:, :N].set(
        targets.astype(jnp.float32))

    TB = _choose_batch_tile(B, D, _LANE, max_batch_tile)
    num_tiles = (B + TB - 1) // TB
    B_pad = num_tiles * TB

    if B_pad != B:
        x = jnp.zeros((B_pad, D), jnp.float32).at[:B].set(x)
        t_pad = jnp.zeros((B_pad, _LANE), jnp.float32).at[:B].set(t_pad)

    kernel = functools.partial(
        _classifier_kernel, num_classes=N, batch_size=B, tile_rows=TB)

    cost = pl.CostEstimate(
        flops=2 * B_pad * D * _LANE,
        transcendentals=B_pad * (_LANE + 1),
        bytes_accessed=4 * (B_pad * D + D * _LANE + 3 * B_pad * _LANE
                            + 2 * num_tiles * 8 * 128),
    )

    logits_pad, loss_part, corr_part = pl.pallas_call(
        kernel,
        out_shape=(
            jax.ShapeDtypeStruct((B_pad, _LANE), jnp.float32),
            jax.ShapeDtypeStruct((num_tiles, 8, 128), jnp.float32),
            jax.ShapeDtypeStruct((num_tiles, 8, 128), jnp.float32),
        ),
        grid_spec=pltpu.PrefetchScalarGridSpec(
            num_scalar_prefetch=0,
            grid=(num_tiles,),
            in_specs=[
                pl.BlockSpec((TB, D), lambda i: (i, 0)),         # x tile (streamed)
                pl.BlockSpec((D, _LANE), lambda i: (0, 0)),      # weight (resident)
                pl.BlockSpec((1, _LANE), lambda i: (0, 0)),      # bias   (resident)
                pl.BlockSpec((TB, _LANE), lambda i: (i, 0)),     # targets tile
            ],
            out_specs=(
                pl.BlockSpec((TB, _LANE), lambda i: (i, 0)),     # logits tile
                pl.BlockSpec((1, 8, 128), lambda i: (i, 0, 0)),  # loss partials
                pl.BlockSpec((1, 8, 128), lambda i: (i, 0, 0)),  # correct partials
            ),
        ),
        compiler_params=pltpu.CompilerParams(
            dimension_semantics=("parallel",),     # batch tiles are independent
            vmem_limit_bytes=32 * 1024 * 1024,
        ),
        cost_estimate=cost,
    )(x, w_pad, b_pad, t_pad)

    logits = logits_pad[:B, :N]
    inv_b = jnp.float32(1.0 / B)
    loss = jnp.sum(loss_part[:, 0, 0]) * inv_b
    acc = jnp.sum(corr_part[:, 0, 0]) * inv_b
    return logits, loss, acc


def classifier_forward_api(image, targets, weight, bias, prefix=""):
    """Mirrors Classifier.forward's return signature: (loss, metrics)."""
    _, loss, acc = classifier_forward(image, targets, weight, bias)
    # TODO(synk): ppe.reporting.report has no Pallas/JAX equivalent; metrics
    # are just returned as a plain dict.
    metrics = {f"{prefix}loss": float(loss), f"{prefix}acc": float(acc)}
    return loss, metrics


def _reference(image, targets, weight, bias):
    B = image.shape[0]
    D = math.prod(image.shape[1:])
    x_flat = image.reshape(B, D)
    logits = x_flat @ weight + bias
    logp = jax.nn.log_softmax(logits, axis=-1)
    loss = jnp.mean(jnp.sum(-targets * logp, axis=-1))
    acc = jnp.mean(
        (jnp.argmax(logits, axis=-1) == jnp.argmax(targets, axis=-1))
        .astype(jnp.float32))
    return logits, loss, acc


if __name__ == "__main__":
    key = jax.random.PRNGKey(0)

    # --- test 1: the canonical tiny problem (B=2, 4x16x16 image, 2 classes) ---
    B, C, H, W = 2, 4, 16, 16
    NUM_CLASSES = 2
    D = C * H * W

    k_img, k_w, k_b, k_lbl, key = jax.random.split(key, 5)
    image = jax.random.normal(k_img, (B, C, H, W), dtype=jnp.float32)
    labels = jax.random.randint(k_lbl, (B,), 0, NUM_CLASSES)
    targets = jax.nn.one_hot(labels, NUM_CLASSES, dtype=jnp.float32)
    weight = (jax.random.normal(k_w, (D, NUM_CLASSES), dtype=jnp.float32)
              * (1.0 / jnp.sqrt(D)))
    bias = jax.random.normal(k_b, (NUM_CLASSES,), dtype=jnp.float32) * 0.01

    logits, loss, acc = classifier_forward(image, targets, weight, bias)
    jax.block_until_ready((logits, loss, acc))

    ref_logits, ref_loss, ref_acc = _reference(image, targets, weight, bias)
    assert jnp.allclose(logits, ref_logits, atol=1e-4, rtol=1e-4)
    assert jnp.allclose(loss, ref_loss, atol=1e-4, rtol=1e-4)
    assert jnp.allclose(acc, ref_acc, atol=1e-6)

    # --- test 2: multi-tile grid with batch padding (B=37, tile=16) ---
    B2 = 37
    k_img, k_lbl, key = jax.random.split(key, 3)
    image2 = jax.random.normal(k_img, (B2, C, H, W), dtype=jnp.float32)
    labels2 = jax.random.randint(k_lbl, (B2,), 0, NUM_CLASSES)
    targets2 = jax.nn.one_hot(labels2, NUM_CLASSES, dtype=jnp.float32)

    logits2, loss2, acc2 = classifier_forward(
        image2, targets2, weight, bias, max_batch_tile=16)
    jax.block_until_ready((logits2, loss2, acc2))

    ref_logits2, ref_loss2, ref_acc2 = _reference(image2, targets2, weight, bias)
    assert jnp.allclose(logits2, ref_logits2, atol=1e-4, rtol=1e-4)
    assert jnp.allclose(loss2, ref_loss2, atol=1e-4, rtol=1e-4)
    assert jnp.allclose(acc2, ref_acc2, atol=1e-6)

    loss_out, metrics = classifier_forward_api(image, targets, weight, bias)
    jax.block_until_ready(loss_out)

    print("KERNEL_OK")
</pallas_src>

<mosaic_0001>
module attributes {stable_mosaic.version = 11 : i64} {
  func.func @_classifier_kernel(%arg0: i32, %arg1: memref<8x1024xf32, #tpu.memory_space<vmem>>, %arg2: memref<1024x128xf32, #tpu.memory_space<vmem>>, %arg3: memref<1x128xf32, #tpu.memory_space<vmem>>, %arg4: memref<8x128xf32, #tpu.memory_space<vmem>>, %arg5: memref<8x128xf32, #tpu.memory_space<vmem>>, %arg6: memref<1x8x128xf32, #tpu.memory_space<vmem>>, %arg7: memref<1x8x128xf32, #tpu.memory_space<vmem>>) attributes {dimension_semantics = [#tpu.dimension_semantics<parallel>], iteration_bounds = array<i64: 1>, scalar_prefetch = 0 : i64, scratch_operands = 0 : i64, tpu.core_type = #tpu.core_type<tc>, window_params = [{transform_indices = @transform_0, window_bounds = array<i64: 8, 1024>}, {pipeline_mode = #tpu.pipeline_mode<synchronous>, transform_indices = @transform_1, window_bounds = array<i64: 1024, 128>}, {pipeline_mode = #tpu.pipeline_mode<synchronous>, transform_indices = @transform_2, window_bounds = array<i64: 1, 128>}, {transform_indices = @transform_3, window_bounds = array<i64: 8, 128>}, {transform_indices = @transform_4, window_bounds = array<i64: 8, 128>}, {transform_indices = @transform_5, window_bounds = array<i64: 1, 8, 128>}, {transform_indices = @transform_6, window_bounds = array<i64: 1, 8, 128>}]} {
    %c0 = arith.constant 0 : index
    %c0_0 = arith.constant 0 : index
    %0 = vector.load %arg1[%c0, %c0_0] : memref<8x1024xf32, #tpu.memory_space<vmem>>, vector<8x1024xf32>
    %c0_1 = arith.constant 0 : index
    %c0_2 = arith.constant 0 : index
    %1 = vector.load %arg2[%c0_1, %c0_2] : memref<1024x128xf32, #tpu.memory_space<vmem>>, vector<1024x128xf32>
    %c0_3 = arith.constant 0 : index
    %c0_4 = arith.constant 0 : index
    %2 = vector.load %arg3[%c0_3, %c0_4] : memref<1x128xf32, #tpu.memory_space<vmem>>, vector<1x128xf32>
    %c0_5 = arith.constant 0 : index
    %c0_6 = arith.constant 0 : index
    %3 = vector.load %arg4[%c0_5, %c0_6] : memref<8x128xf32, #tpu.memory_space<vmem>>, vector<8x128xf32>
    %cst = arith.constant dense<0.000000e+00> : vector<8x128xf32>
    %4 = tpu.matmul %0, %1, %cst {dimension_numbers = #tpu.dot_dimension_numbers<[1], [0], [0], [1], [0, 0, 1, 1], [], []>} : vector<8x1024xf32>, vector<1024x128xf32>, vector<8x128xf32> -> vector<8x128xf32>
    %5 = vector.broadcast %2 : vector<1x128xf32> to vector<8x128xf32>
    %6 = arith.addf %4, %5 : vector<8x128xf32>
    %c0_7 = arith.constant 0 : index
    %c0_8 = arith.constant 0 : index
    %7 = vector.load %arg5[%c0_7, %c0_8] : memref<8x128xf32, #tpu.memory_space<vmem>>, vector<8x128xf32>
    tpu.vector_store %arg5[%c0_7, %c0_8], %6 {strides = array<i32>} : memref<8x128xf32, #tpu.memory_space<vmem>>, vector<8x128xf32>,
    %8 = tpu.iota {dimensions = array<i32: 1>} : vector<8x128xi32>
    %c2_i32 = arith.constant 2 : i32
    %9 = vector.broadcast %c2_i32 : i32 to vector<8x128xi32>
    %10 = arith.cmpi slt, %8, %9 : vector<8x128xi32>
    %cst_9 = arith.constant -1.000000e+30 : f32
    %11 = vector.broadcast %cst_9 : f32 to vector<8x128xf32>
    %12 = arith.select %10, %6, %11 : vector<8x128xi1>, vector<8x128xf32>
    %cst_10 = arith.constant dense<0xFF800000> : vector<8xf32>
    %13 = vector.multi_reduction <maximumf>, %12, %cst_10 [1] : vector<8x128xf32> to vector<8xf32>
    %14 = vector.shape_cast %13 : vector<8xf32> to vector<8x1xf32>
    %15 = vector.broadcast %14 : vector<8x1xf32> to vector<8x128xf32>
    %16 = arith.subf %12, %15 : vector<8x128xf32>
    %17 = math.exp %16 : vector<8x128xf32>
    %cst_11 = arith.constant dense<0.000000e+00> : vector<8xf32>
    %18 = vector.multi_reduction <add>, %17, %cst_11 [1] : vector<8x128xf32> to vector<8xf32>
    %19 = vector.shape_cast %18 : vector<8xf32> to vector<8x1xf32>
    %20 = math.log %19 : vector<8x1xf32>
    %21 = vector.broadcast %20 : vector<8x1xf32> to vector<8x128xf32>
    %22 = arith.subf %16, %21 : vector<8x128xf32>
    %cst_12 = arith.constant 0.000000e+00 : f32
    %23 = vector.broadcast %cst_12 : f32 to vector<8x128xf32>
    %24 = arith.subf %23, %3 : vector<8x128xf32>
    %25 = arith.mulf %24, %22 : vector<8x128xf32>
    %cst_13 = arith.constant dense<0.000000e+00> : vector<8xf32>
    %26 = vector.multi_reduction <add>, %25, %cst_13 [1] : vector<8x128xf32> to vector<8xf32>
    %27 = vector.shape_cast %26 : vector<8xf32> to vector<8x1xf32>
    %28 = tpu.iota {dimensions = array<i32: 0>} : vector<8x1xi32>
    %c8_i32 = arith.constant 8 : i32
    %29 = arith.muli %arg0, %c8_i32 : i32
    %30 = vector.broadcast %29 : i32 to vector<8x1xi32>
    %31 = arith.addi %28, %30 : vector<8x1xi32>
    %c2_i32_14 = arith.constant 2 : i32
    %32 = vector.broadcast %c2_i32_14 : i32 to vector<8x1xi32>
    %33 = arith.cmpi slt, %31, %32 : vector<8x1xi32>
    %cst_15 = arith.constant 0.000000e+00 : f32
    %34 = vector.broadcast %cst_15 : f32 to vector<8x1xf32>
    %35 = arith.select %33, %27, %34 : vector<8x1xi1>, vector<8x1xf32>
    %36 = vector.shape_cast %35 : vector<8x1xf32> to vector<1x8x1xf32>
    %cst_16 = arith.constant dense<0.000000e+00> : vector<1xf32>
    %37 = vector.multi_reduction <add>, %36, %cst_16 [1, 2] : vector<1x8x1xf32> to vector<1xf32>
    %38 = vector.shape_cast %37 : vector<1xf32> to vector<1x1x1xf32>
    %39 = vector.extract %38[0, 0, 0] : f32 from vector<1x1x1xf32>
    %40 = vector.broadcast %14 : vector<8x1xf32> to vector<8x128xf32>
    %41 = arith.cmpf oeq, %12, %40 : vector<8x128xf32>
    %c128_i32 = arith.constant 128 : i32
    %42 = vector.broadcast %c128_i32 : i32 to vector<8x128xi32>
    %43 = arith.select %41, %8, %42 : vector<8x128xi1>, vector<8x128xi32>
    %cst_17 = arith.constant dense<2147483647> : vector<8xi32>
    %44 = vector.multi_reduction <minsi>, %43, %cst_17 [1] : vector<8x128xi32> to vector<8xi32>
    %45 = vector.shape_cast %44 : vector<8xi32> to vector<8x1xi32>
    %cst_18 = arith.constant -1.000000e+30 : f32
    %46 = vector.broadcast %cst_18 : f32 to vector<8x128xf32>
    %47 = arith.select %10, %3, %46 : vector<8x128xi1>, vector<8x128xf32>
    %cst_19 = arith.constant dense<0xFF800000> : vector<8xf32>
    %48 = vector.multi_reduction <maximumf>, %47, %cst_19 [1] : vector<8x128xf32> to vector<8xf32>
    %49 = vector.shape_cast %48 : vector<8xf32> to vector<8x1xf32>
    %50 = vector.broadcast %49 : vector<8x1xf32> to vector<8x128xf32>
    %51 = arith.cmpf oeq, %47, %50 : vector<8x128xf32>
    %c128_i32_20 = arith.constant 128 : i32
    %52 = vector.broadcast %c128_i32_20 : i32 to vector<8x128xi32>
    %53 = arith.select %51, %8, %52 : vector<8x128xi1>, vector<8x128xi32>
    %cst_21 = arith.constant dense<2147483647> : vector<8xi32>
    %54 = vector.multi_reduction <minsi>, %53, %cst_21 [1] : vector<8x128xi32> to vector<8xi32>
    %55 = vector.shape_cast %54 : vector<8xi32> to vector<8x1xi32>
    %56 = arith.cmpi eq, %45, %55 : vector<8x1xi32>
    %57 = arith.andi %33, %56 : vector<8x1xi1>
    %cst_22 = arith.constant 1.000000e+00 : f32
    %cst_23 = arith.constant 0.000000e+00 : f32
    %58 = vector.broadcast %cst_22 : f32 to vector<8x1xf32>
    %59 = vector.broadcast %cst_23 : f32 to vector<8x1xf32>
    %60 = arith.select %57, %58, %59 : vector<8x1xi1>, vector<8x1xf32>
    %61 = vector.shape_cast %60 : vector<8x1xf32> to vector<1x8x1xf32>
    %cst_24 = arith.constant dense<0.000000e+00> : vector<1xf32>
    %62 = vector.multi_reduction <add>, %61, %cst_24 [1, 2] : vector<1x8x1xf32> to vector<1xf32>
    %63 = vector.shape_cast %62 : vector<1xf32> to vector<1x1x1xf32>
    %64 = vector.extract %63[0, 0, 0] : f32 from vector<1x1x1xf32>
    %65 = vector.broadcast %39 : f32 to vector<1x8x128xf32>
    %c0_25 = arith.constant 0 : index
    %c0_26 = arith.constant 0 : index
    %c0_27 = arith.constant 0 : index
    %66 = vector.load %arg6[%c0_25, %c0_26, %c0_27] : memref<1x8x128xf32, #tpu.memory_space<vmem>>, vector<1x8x128xf32>
    tpu.vector_store %arg6[%c0_25, %c0_26, %c0_27], %65 {strides = array<i32>} : memref<1x8x128xf32, #tpu.memory_space<vmem>>, vector<1x8x128xf32>,
    %67 = vector.broadcast %64 : f32 to vector<1x8x128xf32>
    %c0_28 = arith.constant 0 : index
    %c0_29 = arith.constant 0 : index
    %c0_30 = arith.constant 0 : index
    %68 = vector.load %arg7[%c0_28, %c0_29, %c0_30] : memref<1x8x128xf32, #tpu.memory_space<vmem>>, vector<1x8x128xf32>
    tpu.vector_store %arg7[%c0_28, %c0_29, %c0_30], %67 {strides = array<i32>} : memref<1x8x128xf32, #tpu.memory_space<vmem>>, vector<1x8x128xf32>,
    return
  }
  func.func @transform_0(%arg0: i32) -> (i32, i32) {
    %c0_i32 = arith.constant 0 : i32
    %c0_i32_0 = arith.constant 0 : i32
    return %arg0, %c0_i32 : i32, i32
  }
  func.func @transform_1(%arg0: i32) -> (i32, i32) {
    %c0_i32 = arith.constant 0 : i32
    %c0_i32_0 = arith.constant 0 : i32
    %c0_i32_1 = arith.constant 0 : i32
    return %c0_i32, %c0_i32_0 : i32, i32
  }
  func.func @transform_2(%arg0: i32) -> (i32, i32) {
    %c0_i32 = arith.constant 0 : i32
    %c0_i32_0 = arith.constant 0 : i32
    %c0_i32_1 = arith.constant 0 : i32
    return %c0_i32, %c0_i32_0 : i32, i32
  }
  func.func @transform_3(%arg0: i32) -> (i32, i32) {
    %c0_i32 = arith.constant 0 : i32
    %c0_i32_0 = arith.constant 0 : i32
    return %arg0, %c0_i32 : i32, i32
  }
  func.func @transform_4(%arg0: i32) -> (i32, i32) {
    %c0_i32 = arith.constant 0 : i32
    %c0_i32_0 = arith.constant 0 : i32
    return %arg0, %c0_i32 : i32, i32
  }
  func.func @transform_5(%arg0: i32) -> (i32, i32, i32) {
    %c0_i32 = arith.constant 0 : i32
    %c0_i32_0 = arith.constant 0 : i32
    %c0_i32_1 = arith.constant 0 : i32
    return %arg0, %c0_i32, %c0_i32_0 : i32, i32, i32
  }
  func.func @transform_6(%arg0: i32) -> (i32, i32, i32) {
    %c0_i32 = arith.constant 0 : i32
    %c0_i32_0 = arith.constant 0 : i32
    %c0_i32_1 = arith.constant 0 : i32
    return %arg0, %c0_i32, %c0_i32_0 : i32, i32, i32
  }
}

</mosaic_0001>

<llo_original>
// kernel: classifier_forward.1
$region0: #{classifier_forward.1}
  #allocation0 [shape = 'u32[]', space=smem, size = 0x4, offset = 0x4, fixed_abs, tag = 'smem constant byte address 0x4 - core index']
  #allocation1 [shape = 'u32[72,128]{1,0:T(1,128)}', space=vmem, size = 0x9000, scoped, tag = 'internal scratch']
  %s0 = inlined_call_operand.vmem [shape: f32[8,1024], index: 0, kind: input, shape index: {}]
  %s1 = inlined_call_operand.vmem [shape: f32[1024,128], index: 1, kind: input, shape index: {}]
  %s2 = inlined_call_operand.vmem [shape: f32[1,128], index: 2, kind: input, shape index: {}]
  %s3 = inlined_call_operand.vmem [shape: f32[8,128], index: 3, kind: input, shape index: {}]
  %s4 = inlined_call_operand.vmem [shape: f32[8,128], index: 4, kind: output, shape index: {0}]
  %s5 = inlined_call_operand.vmem [shape: f32[1,8,128], index: 5, kind: output, shape index: {1}]
  %s6 = inlined_call_operand.vmem [shape: f32[1,8,128], index: 6, kind: output, shape index: {2}]
  %7 = xla_tuple %s4, %s5, %s6
  %s8 = sld [smem:[#allocation0]]
  $region42: #{classifier_forward.1} parent=0
    _
  %s10 = ssub.s32 1, %s8
  %s11 = scalar_select 0, %s10, %s8
  // Predicated region
  $region2: #{classifier_forward.1} parent=0 // pred_check
    _
  $region3: #{classifier_forward.1} parent=0 // pred_check_branch
    %13 = sbr.rel (0) target = $region5
  $region4: #{classifier_forward.1} parent=0 // pred_region
    _
  $region5: #{classifier_forward.1} parent=0 // pred_fallthru
    _
  // Predicated region
  $region6: #{classifier_forward.1} parent=0 // pred_check
    _
  $region7: #{classifier_forward.1} parent=0 // pred_check_branch
    %15 = sbr.rel (0) target = $region9
  $region8: #{classifier_forward.1} parent=0 // pred_region
    _
  $region9: #{classifier_forward.1} parent=0 // pred_fallthru
    _
  // Predicated region
  $region10: #{classifier_forward.1} parent=0 // pred_check
    _
  $region11: #{classifier_forward.1} parent=0 // pred_check_branch
    %17 = sbr.rel (0) target = $region13
  $region12: #{classifier_forward.1} parent=0 // pred_region
    _
  $region13: #{classifier_forward.1} parent=0 // pred_fallthru
    _
  // Predicated region
  $region14: #{classifier_forward.1} parent=0 // pred_check
    _
  $region15: #{classifier_forward.1} parent=0 // pred_check_branch
    %19 = sbr.rel (0) target = $region17
  $region16: #{classifier_forward.1} parent=0 // pred_region
    _
  $region17: #{classifier_forward.1} parent=0 // pred_fallthru
    _
  %v20 = vld [vmem:[%s0] sm:$0xff]
  %v21 = vld [vmem:[%s0 + $0x8] sm:$0xff]
  %v22 = vld [vmem:[%s0 + $0x10] sm:$0xff]
  %v23 = vld [vmem:[%s0 + $0x18] sm:$0xff]
  %v24 = vld [vmem:[%s0 + $0x20] sm:$0xff]
  %v25 = vld [vmem:[%s0 + $0x28] sm:$0xff]
  %v26 = vld [vmem:[%s0 + $0x30] sm:$0xff]
  %v27 = vld [vmem:[%s0 + $0x38] sm:$0xff]
  %v28 = vld [vmem:[%s1] sm:$0xff]
  %v29 = vld [vmem:[%s1 + $0x8] sm:$0xff]
  %v30 = vld [vmem:[%s1 + $0x10] sm:$0xff]
  %v31 = vld [vmem:[%s1 + $0x18] sm:$0xff]
  %v32 = vld [vmem:[%s1 + $0x20] sm:$0xff]
  %v33 = vld [vmem:[%s1 + $0x28] sm:$0xff]
  %v34 = vld [vmem:[%s1 + $0x30] sm:$0xff]
  %v35 = vld [vmem:[%s1 + $0x38] sm:$0xff]
  %v36 = vld [vmem:[%s1 + $0x40] sm:$0xff]
  %v37 = vld [vmem:[%s1 + $0x48] sm:$0xff]
  %v38 = vld [vmem:[%s1 + $0x50] sm:$0xff]
  %v39 = vld [vmem:[%s1 + $0x58] sm:$0xff]
  %v40 = vld [vmem:[%s1 + $0x60] sm:$0xff]
  %v41 = vld [vmem:[%s1 + $0x68] sm:$0xff]
  %v42 = vld [vmem:[%s1 + $0x70] sm:$0xff]
  %v43 = vld [vmem:[%s1 + $0x78] sm:$0xff]
  %v44 = vld [vmem:[%s1 + $0x80] sm:$0xff]
  %v45 = vld [vmem:[%s1 + $0x88] sm:$0xff]
  %v46 = vld [vmem:[%s1 + $0x90] sm:$0xff]
  %v47 = vld [vmem:[%s1 + $0x98] sm:$0xff]
  %v48 = vld [vmem:[%s1 + $0xa0] sm:$0xff]
  %v49 = vld [vmem:[%s1 + $0xa8] sm:$0xff]
  %v50 = vld [vmem:[%s1 + $0xb0] sm:$0xff]
  %v51 = vld [vmem:[%s1 + $0xb8] sm:$0xff]
  %v52 = vld [vmem:[%s1 + $0xc0] sm:$0xff]
  %v53 = vld [vmem:[%s1 + $0xc8] sm:$0xff]
  %v54 = vld [vmem:[%s1 + $0xd0] sm:$0xff]
  %v55 = vld [vmem:[%s1 + $0xd8] sm:$0xff]
  %v56 = vld [vmem:[%s1 + $0xe0] sm:$0xff]
  %v57 = vld [vmem:[%s1 + $0xe8] sm:$0xff]
  %v58 = vld [vmem:[%s1 + $0xf0] sm:$0xff]
  %v59 = vld [vmem:[%s1 + $0xf8] sm:$0xff]
  %v60 = vld [vmem:[%s1 + $0x100] sm:$0xff]
  %v61 = vld [vmem:[%s1 + $0x108] sm:$0xff]
  %v62 = vld [vmem:[%s1 + $0x110] sm:$0xff]
  %v63 = vld [vmem:[%s1 + $0x118] sm:$0xff]
  %v64 = vld [vmem:[%s1 + $0x120] sm:$0xff]
  %v65 = vld [vmem:[%s1 + $0x128] sm:$0xff]
  %v66 = vld [vmem:[%s1 + $0x130] sm:$0xff]
  %v67 = vld [vmem:[%s1 + $0x138] sm:$0xff]
  %v68 = vld [vmem:[%s1 + $0x140] sm:$0xff]
  %v69 = vld [vmem:[%s1 + $0x148] sm:$0xff]
  %v70 = vld [vmem:[%s1 + $0x150] sm:$0xff]
  %v71 = vld [vmem:[%s1 + $0x158] sm:$0xff]
  %v72 = vld [vmem:[%s1 + $0x160] sm:$0xff]
  %v73 = vld [vmem:[%s1 + $0x168] sm:$0xff]
  %v74 = vld [vmem:[%s1 + $0x170] sm:$0xff]
  %v75 = vld [vmem:[%s1 + $0x178] sm:$0xff]
  %v76 = vld [vmem:[%s1 + $0x180] sm:$0xff]
  %v77 = vld [vmem:[%s1 + $0x188] sm:$0xff]
  %v78 = vld [vmem:[%s1 + $0x190] sm:$0xff]
  %v79 = vld [vmem:[%s1 + $0x198] sm:$0xff]
  %v80 = vld [vmem:[%s1 + $0x1a0] sm:$0xff]
  %v81 = vld [vmem:[%s1 + $0x1a8] sm:$0xff]
  %v82 = vld [vmem:[%s1 + $0x1b0] sm:$0xff]
  %v83 = vld [vmem:[%s1 + $0x1b8] sm:$0xff]
  %v84 = vld [vmem:[%s1 + $0x1c0] sm:$0xff]
  %v85 = vld [vmem:[%s1 + $0x1c8] sm:$0xff]
  %v86 = vld [vmem:[%s1 + $0x1d0] sm:$0xff]
  %v87 = vld [vmem:[%s1 + $0x1d8] sm:$0xff]
  %v88 = vld [vmem:[%s1 + $0x1e0] sm:$0xff]
  %v89 = vld [vmem:[%s1 + $0x1e8] sm:$0xff]
  %v90 = vld [vmem:[%s1 + $0x1f0] sm:$0xff]
  %v91 = vld [vmem:[%s1 + $0x1f8] sm:$0xff]
  %v92 = vld [vmem:[%s1 + $0x200] sm:$0xff]
  %v93 = vld [vmem:[%s1 + $0x208] sm:$0xff]
  %v94 = vld [vmem:[%s1 + $0x210] sm:$0xff]
  %v95 = vld [vmem:[%s1 + $0x218] sm:$0xff]
  %v96 = vld [vmem:[%s1 + $0x220] sm:$0xff]
  %v97 = vld [vmem:[%s1 + $0x228] sm:$0xff]
  %v98 = vld [vmem:[%s1 + $0x230] sm:$0xff]
  %v99 = vld [vmem:[%s1 + $0x238] sm:$0xff]
  %v100 = vld [vmem:[%s1 + $0x240] sm:$0xff]
  %v101 = vld [vmem:[%s1 + $0x248] sm:$0xff]
  %v102 = vld [vmem:[%s1 + $0x250] sm:$0xff]
  %v103 = vld [vmem:[%s1 + $0x258] sm:$0xff]
  %v104 = vld [vmem:[%s1 + $0x260] sm:$0xff]
  %v105 = vld [vmem:[%s1 + $0x268] sm:$0xff]
  %v106 = vld [vmem:[%s1 + $0x270] sm:$0xff]
  %v107 = vld [vmem:[%s1 + $0x278] sm:$0xff]
  %v108 = vld [vmem:[%s1 + $0x280] sm:$0xff]
  %v109 = vld [vmem:[%s1 + $0x288] sm:$0xff]
  %v110 = vld [vmem:[%s1 + $0x290] sm:$0xff]
  %v111 = vld [vmem:[%s1 + $0x298] sm:$0xff]
  %v112 = vld [vmem:[%s1 + $0x2a0] sm:$0xff]
  %v113 = vld [vmem:[%s1 + $0x2a8] sm:$0xff]
  %v114 = vld [vmem:[%s1 + $0x2b0] sm:$0xff]
  %v115 = vld [vmem:[%s1 + $0x2b8] sm:$0xff]
  %v116 = vld [vmem:[%s1 + $0x2c0] sm:$0xff]
  %v117 = vld [vmem:[%s1 + $0x2c8] sm:$0xff]
  %v118 = vld [vmem:[%s1 + $0x2d0] sm:$0xff]
  %v119 = vld [vmem:[%s1 + $0x2d8] sm:$0xff]
  %v120 = vld [vmem:[%s1 + $0x2e0] sm:$0xff]
  %v121 = vld [vmem:[%s1 + $0x2e8] sm:$0xff]
  %v122 = vld [vmem:[%s1 + $0x2f0] sm:$0xff]
  %v123 = vld [vmem:[%s1 + $0x2f8] sm:$0xff]
  %v124 = vld [vmem:[%s1 + $0x300] sm:$0xff]
  %v125 = vld [vmem:[%s1 + $0x308] sm:$0xff]
  %v126 = vld [vmem:[%s1 + $0x310] sm:$0xff]
  %v127 = vld [vmem:[%s1 + $0x318] sm:$0xff]
  %v128 = vld [vmem:[%s1 + $0x320] sm:$0xff]
  %v129 = vld [vmem:[%s1 + $0x328] sm:$0xff]
  %v130 = vld [vmem:[%s1 + $0x330] sm:$0xff]
  %v131 = vld [vmem:[%s1 + $0x338] sm:$0xff]
  %v132 = vld [vmem:[%s1 + $0x340] sm:$0xff]
  %v133 = vld [vmem:[%s1 + $0x348] sm:$0xff]
  %v134 = vld [vmem:[%s1 + $0x350] sm:$0xff]
  %v135 = vld [vmem:[%s1 + $0x358] sm:$0xff]
  %v136 = vld [vmem:[%s1 + $0x360] sm:$0xff]
  %v137 = vld [vmem:[%s1 + $0x368] sm:$0xff]
  %v138 = vld [vmem:[%s1 + $0x370] sm:$0xff]
  %v139 = vld [vmem:[%s1 + $0x378] sm:$0xff]
  %v140 = vld [vmem:[%s1 + $0x380] sm:$0xff]
  %v141 = vld [vmem:[%s1 + $0x388] sm:$0xff]
  %v142 = vld [vmem:[%s1 + $0x390] sm:$0xff]
  %v143 = vld [vmem:[%s1 + $0x398] sm:$0xff]
  %v144 = vld [vmem:[%s1 + $0x3a0] sm:$0xff]
  %v145 = vld [vmem:[%s1 + $0x3a8] sm:$0xff]
  %v146 = vld [vmem:[%s1 + $0x3b0] sm:$0xff]
  %v147 = vld [vmem:[%s1 + $0x3b8] sm:$0xff]
  %v148 = vld [vmem:[%s1 + $0x3c0] sm:$0xff]
  %v149 = vld [vmem:[%s1 + $0x3c8] sm:$0xff]
  %v150 = vld [vmem:[%s1 + $0x3d0] sm:$0xff]
  %v151 = vld [vmem:[%s1 + $0x3d8] sm:$0xff]
  %v152 = vld [vmem:[%s1 + $0x3e0] sm:$0xff]
  %v153 = vld [vmem:[%s1 + $0x3e8] sm:$0xff]
  %v154 = vld [vmem:[%s1 + $0x3f0] sm:$0xff]
  %v155 = vld [vmem:[%s1 + $0x3f8] sm:$0xff]
  %v156 = vld [vmem:[%s2] sm:$0x1]
  %v157 = vld [vmem:[%s3] sm:$0xff]
  %v159 = vperm.slane %v156, 0
  %161 = vmatpush.msra.mxu0 %v43
  %162 = vmatpush.msra.mxu0 %v42
  %163 = vmatpush.msra.mxu0 %v41
  %164 = vmatpush.msra.mxu0 %v40
  %165 = vmatpush.msra.mxu0 %v39
  %166 = vmatpush.msra.mxu0 %v38
  %167 = vmatpush.msra.mxu0 %v37
  %168 = vmatpush.msra.mxu0 %v36
  %169 = vmatpush.msra.mxu0 %v35
  %170 = vmatpush.msra.mxu0 %v34
  %171 = vmatpush.msra.mxu0 %v33
  %172 = vmatpush.msra.mxu0 %v32
  %173 = vmatpush.msra.mxu0 %v31
  %174 = vmatpush.msra.mxu0 %v30
  %175 = vmatpush.msra.mxu0 %v29
  %176 = vmatpush.msra.mxu0 %v28
  %177 = vmatmul.f32.gmra.mxu0 %v20
  %v178 = vpop.f32.mrf.mxu0
  %v179 = vadd.f32 %v159, %v178
  %180 = vdwg.mxu0
  %181 = vmatpush.msra.mxu0 %v59
  %182 = vmatpush.msra.mxu0 %v58
  %183 = vmatpush.msra.mxu0 %v57
  %184 = vmatpush.msra.mxu0 %v56
  %185 = vmatpush.msra.mxu0 %v55
  %186 = vmatpush.msra.mxu0 %v54
  %187 = vmatpush.msra.mxu0 %v53
  %188 = vmatpush.msra.mxu0 %v52
  %189 = vmatpush.msra.mxu0 %v51
  %190 = vmatpush.msra.mxu0 %v50
  %191 = vmatpush.msra.mxu0 %v49
  %192 = vmatpush.msra.mxu0 %v48
  %193 = vmatpush.msra.mxu0 %v47
  %194 = vmatpush.msra.mxu0 %v46
  %195 = vmatpush.msra.mxu0 %v45
  %196 = vmatpush.msra.mxu0 %v44
  %197 = vmatmul.f32.gmra.mxu0 %v21
  %v198 = vpop.f32.mrf.mxu0
  %v199 = vadd.f32 %v179, %v198
  %200 = vdwg.mxu0
  %201 = vmatpush.msra.mxu0 %v75
  %202 = vmatpush.msra.mxu0 %v74
  %203 = vmatpush.msra.mxu0 %v73
  %204 = vmatpush.msra.mxu0 %v72
  %205 = vmatpush.msra.mxu0 %v71
  %206 = vmatpush.msra.mxu0 %v70
  %207 = vmatpush.msra.mxu0 %v69
  %208 = vmatpush.msra.mxu0 %v68
  %209 = vmatpush.msra.mxu0 %v67
  %210 = vmatpush.msra.mxu0 %v66
  %211 = vmatpush.msra.mxu0 %v65
  %212 = vmatpush.msra.mxu0 %v64
  %213 = vmatpush.msra.mxu0 %v63
  %214 = vmatpush.msra.mxu0 %v62
  %215 = vmatpush.msra.mxu0 %v61
  %216 = vmatpush.msra.mxu0 %v60
  %217 = vmatmul.f32.gmra.mxu0 %v22
  %v218 = vpop.f32.mrf.mxu0
  %v219 = vadd.f32 %v199, %v218
  %220 = vdwg.mxu0
  %221 = vmatpush.msra.mxu0 %v91
  %222 = vmatpush.msra.mxu0 %v90
  %223 = vmatpush.msra.mxu0 %v89
  %224 = vmatpush.msra.mxu0 %v88
  %225 = vmatpush.msra.mxu0 %v87
  %226 = vmatpush.msra.mxu0 %v86
  %227 = vmatpush.msra.mxu0 %v85
  %228 = vmatpush.msra.mxu0 %v84
  %229 = vmatpush.msra.mxu0 %v83
  %230 = vmatpush.msra.mxu0 %v82
  %231 = vmatpush.msra.mxu0 %v81
  %232 = vmatpush.msra.mxu0 %v80
  %233 = vmatpush.msra.mxu0 %v79
  %234 = vmatpush.msra.mxu0 %v78
  %235 = vmatpush.msra.mxu0 %v77
  %236 = vmatpush.msra.mxu0 %v76
  %237 = vmatmul.f32.gmra.mxu0 %v23
  %v238 = vpop.f32.mrf.mxu0
  %v239 = vadd.f32 %v219, %v238
  %240 = vdwg.mxu0
  %241 = vmatpush.msra.mxu0 %v107
  %242 = vmatpush.msra.mxu0 %v106
  %243 = vmatpush.msra.mxu0 %v105
  %244 = vmatpush.msra.mxu0 %v104
  %245 = vmatpush.msra.mxu0 %v103
  %246 = vmatpush.msra.mxu0 %v102
  %247 = vmatpush.msra.mxu0 %v101
  %248 = vmatpush.msra.mxu0 %v100
  %249 = vmatpush.msra.mxu0 %v99
  %250 = vmatpush.msra.mxu0 %v98
  %251 = vmatpush.msra.mxu0 %v97
  %252 = vmatpush.msra.mxu0 %v96
  %253 = vmatpush.msra.mxu0 %v95
  %254 = vmatpush.msra.mxu0 %v94
  %255 = vmatpush.msra.mxu0 %v93
  %256 = vmatpush.msra.mxu0 %v92
  %257 = vmatmul.f32.gmra.mxu0 %v24
  %v258 = vpop.f32.mrf.mxu0
  %v259 = vadd.f32 %v239, %v258
  %260 = vdwg.mxu0
  %261 = vmatpush.msra.mxu0 %v123
  %262 = vmatpush.msra.mxu0 %v122
  %263 = vmatpush.msra.mxu0 %v121
  %264 = vmatpush.msra.mxu0 %v120
  %265 = vmatpush.msra.mxu0 %v119
  %266 = vmatpush.msra.mxu0 %v118
  %267 = vmatpush.msra.mxu0 %v117
  %268 = vmatpush.msra.mxu0 %v116
  %269 = vmatpush.msra.mxu0 %v115
  %270 = vmatpush.msra.mxu0 %v114
  %271 = vmatpush.msra.mxu0 %v113
  %272 = vmatpush.msra.mxu0 %v112
  %273 = vmatpush.msra.mxu0 %v111
  %274 = vmatpush.msra.mxu0 %v110
  %275 = vmatpush.msra.mxu0 %v109
  %276 = vmatpush.msra.mxu0 %v108
  %277 = vmatmul.f32.gmra.mxu0 %v25
  %v278 = vpop.f32.mrf.mxu0
  %v279 = vadd.f32 %v259, %v278
  %280 = vdwg.mxu0
  %281 = vmatpush.msra.mxu0 %v139
  %282 = vmatpush.msra.mxu0 %v138
  %283 = vmatpush.msra.mxu0 %v137
  %284 = vmatpush.msra.mxu0 %v136
  %285 = vmatpush.msra.mxu0 %v135
  %286 = vmatpush.msra.mxu0 %v134
  %287 = vmatpush.msra.mxu0 %v133
  %288 = vmatpush.msra.mxu0 %v132
  %289 = vmatpush.msra.mxu0 %v131
  %290 = vmatpush.msra.mxu0 %v130
  %291 = vmatpush.msra.mxu0 %v129
  %292 = vmatpush.msra.mxu0 %v128
  %293 = vmatpush.msra.mxu0 %v127
  %294 = vmatpush.msra.mxu0 %v126
  %295 = vmatpush.msra.mxu0 %v125
  %296 = vmatpush.msra.mxu0 %v124
  %297 = vmatmul.f32.gmra.mxu0 %v26
  %v298 = vpop.f32.mrf.mxu0
  %v299 = vadd.f32 %v279, %v298
  %300 = vdwg.mxu0
  %301 = vmatpush.msra.mxu0 %v155
  %302 = vmatpush.msra.mxu0 %v154
  %303 = vmatpush.msra.mxu0 %v153
  %304 = vmatpush.msra.mxu0 %v152
  %305 = vmatpush.msra.mxu0 %v151
  %306 = vmatpush.msra.mxu0 %v150
  %307 = vmatpush.msra.mxu0 %v149
  %308 = vmatpush.msra.mxu0 %v148
  %309 = vmatpush.msra.mxu0 %v147
  %310 = vmatpush.msra.mxu0 %v146
  %311 = vmatpush.msra.mxu0 %v145
  %312 = vmatpush.msra.mxu0 %v144
  %313 = vmatpush.msra.mxu0 %v143
  %314 = vmatpush.msra.mxu0 %v142
  %315 = vmatpush.msra.mxu0 %v141
  %316 = vmatpush.msra.mxu0 %v140
  %317 = vmatmul.f32.gmra.mxu0 %v27
  %v318 = vpop.f32.mrf.mxu0
  %v319 = vadd.f32 %v299, %v318
  %320 = vdwg.mxu0
  %321 = vst [vmem:[%s4] sm:$0xff] %v319
  %v322 = vlaneseq
  %v323 = vand.u32 %v322, 127
  %vm324 = vcmp.lt.s32.totalorder %v323, 2
  %v325 = vsel %vm324, %v319, -1e+30
  %326 = vmax.xlane.f32.xlu0 %v325
  %v327 = vpop.xlane.xlu0 %326
  %v328 = vsub.f32 %v325, %v327
  %v329 = vmul.f32 %v328, 1.442695
  %v330 = vpow.pop %v329
  %331 = vadd.xlane.f32.xlu0 %v330
  %v332 = vpop.xlane.xlu0 %331
  %v333 = vlog2.pop %v332
  %v334 = vmul.f32 %v333, 0.6931472
  %v335 = vsub.f32 %v328, %v334
  %v336 = vsub.f32 0.0, %v157
  %v337 = vmul.f32 %v336, %v335
  %338 = vadd.xlane.f32.xlu0 %v337
  %v339 = vpop.xlane.xlu0 %338
  %v340 = vlaneseq
  %v341 = vshrl.u32 %v340, 7
  %s342 = smul.u32 0, 8
  %v343 = vstv %s342
  %v344 = vadd.s32 %v341, %v343
  %vm345 = vcmp.lt.s32.totalorder %v344, 2
  %v346 = vsel %vm345, %v339, 0.0
  %vm347 = vcmask 7168
  %v348 = vsel %vm347, %v346, 0.0
  %349 = vadd.xlane.f32.xlu0 %v348
  %v350 = vpop.xlane.xlu0 %349
  %v351 = vrot.slane %v350, 4
  %v352 = vadd.f32 %v350, %v351
  %v353 = vrot.slane %v352, 2
  %v354 = vadd.f32 %v352, %v353
  %v355 = vrot.slane %v354, 1
  %v356 = vadd.f32 %v354, %v355
  %s357 = vtos %v356
  %vm358 = vcmp.eq.f32.partialorder %v325, %v327
  %v359 = vsel %vm358, %v323, 128
  %v360 = vand.u32 %v359, 65535
  %v361 = vshra.s32 %v359, 16
  %v362 = vcvt.s32.f32 %v360
  %v363 = vcvt.s32.f32 %v361
  %364 = vmin.xlane.f32.xlu0 %v363
  %v365 = vpop.xlane.xlu0 %364
  %vm366 = vcmp.eq.f32.partialorder %v363, %v365
  %v367 = vsel %vm366, %v362, inf
  %368 = vmin.xlane.f32.xlu0 %v367
  %v369 = vpop.xlane.xlu0 %368
  %v370 = vcvt.f32.s32 %v369
  %v371 = vcvt.f32.s32 %v365
  %v372 = vshll.u32 %v371, 16
  %v373 = vadd.s32 %v372, %v370
  %v374 = vsel %vm324, %v157, -1e+30
  %375 = vmax.xlane.f32.xlu0 %v374
  %v376 = vpop.xlane.xlu0 %375
  %vm377 = vcmp.eq.f32.partialorder %v374, %v376
  %v378 = vsel %vm377, %v323, 128
  %v379 = vand.u32 %v378, 65535
  %v380 = vshra.s32 %v378, 16
  %v381 = vcvt.s32.f32 %v379
  %v382 = vcvt.s32.f32 %v380
  %383 = vmin.xlane.f32.xlu0 %v382
  %v384 = vpop.xlane.xlu0 %383
  %vm385 = vcmp.eq.f32.partialorder %v382, %v384
  %v386 = vsel %vm385, %v381, inf
  %387 = vmin.xlane.f32.xlu0 %v386
  %v388 = vpop.xlane.xlu0 %387
  %v389 = vcvt.f32.s32 %v388
  %v390 = vcvt.f32.s32 %v384
  %v391 = vshll.u32 %v390, 16
  %v392 = vadd.s32 %v391, %v389
  %vm393 = vcmp.eq.s32.totalorder %v373, %v392
  %vm394 = vmand %vm345, %vm393
  %v395 = vsel %vm394, 1.0, 0.0
  %v396 = vsel %vm347, %v395, 0.0
  %397 = vadd.xlane.f32.xlu0 %v396
  %v398 = vpop.xlane.xlu0 %397
  %v399 = vrot.slane %v398, 4
  %v400 = vadd.f32 %v398, %v399
  %v401 = vrot.slane %v400, 2
  %v402 = vadd.f32 %v400, %v401
  %v403 = vrot.slane %v402, 1
  %v404 = vadd.f32 %v402, %v403
  %s405 = vtos %v404
  %v406 = vstv %s357
  %407 = vst [vmem:[%s5] sm:$0xff] %v406
  %v408 = vstv %s405
  %409 = vst [vmem:[%s6] sm:$0xff] %v408
  // Predicated region
  $region18: #{classifier_forward.1} parent=0 // pred_check
    _
  $region19: #{classifier_forward.1} parent=0 // pred_check_branch
    %411 = sbr.rel (0) target = $region21
  $region20: #{classifier_forward.1} parent=0 // pred_region
    _
  $region21: #{classifier_forward.1} parent=0 // pred_fallthru
    _
  // Predicated region
  $region22: #{classifier_forward.1} parent=0 // pred_check
    _
  $region23: #{classifier_forward.1} parent=0 // pred_check_branch
    %413 = sbr.rel (0) target = $region25
  $region24: #{classifier_forward.1} parent=0 // pred_region
    _
  $region25: #{classifier_forward.1} parent=0 // pred_fallthru
    _
  // Predicated region
  $region26: #{classifier_forward.1} parent=0 // pred_check
    _
  $region27: #{classifier_forward.1} parent=0 // pred_check_branch
    %415 = sbr.rel (0) target = $region29
  $region28: #{classifier_forward.1} parent=0 // pred_region
    _
  $region29: #{classifier_forward.1} parent=0 // pred_fallthru
    _
  // Predicated region
  $region30: #{classifier_forward.1} parent=0 // pred_check
    _
  $region31: #{classifier_forward.1} parent=0 // pred_check_branch
    %417 = sbr.rel (0) target = $region33
  $region32: #{classifier_forward.1} parent=0 // pred_region
    _
  $region33: #{classifier_forward.1} parent=0 // pred_fallthru
    _
  // Predicated region
  $region34: #{classifier_forward.1} parent=0 // pred_check
    _
  $region35: #{classifier_forward.1} parent=0 // pred_check_branch
    %419 = sbr.rel (0) target = $region37
  $region36: #{classifier_forward.1} parent=0 // pred_region
    _
  $region37: #{classifier_forward.1} parent=0 // pred_fallthru
    _
  // Predicated region
  $region38: #{classifier_forward.1} parent=0 // pred_check
    _
  $region39: #{classifier_forward.1} parent=0 // pred_check_branch
    %421 = sbr.rel (0) target = $region41
  $region40: #{classifier_forward.1} parent=0 // pred_region
    _
  $region41: #{classifier_forward.1} parent=0 // pred_fallthru
    _

</llo_original>
